<compile_context>
chip_gen: v7x
topology: tpu7x:2x2x1
jax: 0.10.0
libtpu: 0.0.40
codegen_flags: <defaults>
</compile_context>

<pallas_src>
import functools

import jax
import jax.numpy as jnp
from jax.experimental import pallas as pl
from jax.experimental.pallas import tpu as pltpu

INPUT_SIZE = 12
NUM_CLASSES = 6
HIDDEN = [64, 128, 256, 256, 128, 64]

IN_PAD = 128          # input features padded 12 -> 128 lanes
OUT_PAD = 128         # output classes padded 6 -> 128 lanes
# Padded (in, out) dims per layer (every dim a multiple of 128):
PAD_DIMS = [(128, 128), (128, 128), (128, 256), (256, 256),
            (256, 128), (128, 128), (128, 128)]
LAYER_OUT = [d_out for (_, d_out) in PAD_DIMS]   # padded output width per layer
BIAS_ROWS, BIAS_COLS = 8, 256                    # packed-bias buffer (sublane/lane aligned)


def _round_up(x, m):
    return ((x + m - 1) // m) * m


def mlp_kernel(x_ref,
               w1_ref, w2_ref, w3_ref, w4_ref, w5_ref, w6_ref, w7_ref,
               b_ref, o_ref):
    """One batch tile: 7 bf16 MXU matmuls (f32 accumulation) + f32 bias + ReLU."""
    w_refs = (w1_ref, w2_ref, w3_ref, w4_ref, w5_ref, w6_ref, w7_ref)
    n = len(w_refs)
    h = x_ref[...]                                     # bf16 (TB, 128)
    for i, w_ref in enumerate(w_refs):
        out_w = LAYER_OUT[i]
        # bf16 x bf16 -> f32 accumulate on the MXU.
        y = jnp.dot(h, w_ref[...], preferred_element_type=jnp.float32)
        y = y + b_ref[i:i + 1, :out_w]                 # f32 bias, broadcasts over rows
        if i < n - 1:
            h = jnp.maximum(y, 0.0).astype(jnp.bfloat16)   # ReLU, back to bf16 for MXU
        else:
            h = y
    o_ref[...] = h.astype(jnp.bfloat16)                # lane-dense bf16 (TB, 128) store


def init_params(key, input_size=INPUT_SIZE, num_classes=NUM_CLASSES):
    """Deterministic PyTorch-style uniform init. Weights stored as (in, out), f32."""
    dims = [input_size] + HIDDEN + [num_classes]
    params = []
    for i in range(len(dims) - 1):
        fan_in, fan_out = dims[i], dims[i + 1]
        key, kw, kb = jax.random.split(key, 3)
        bound = 1.0 / jnp.sqrt(fan_in)
        w = jax.random.uniform(kw, (fan_in, fan_out), jnp.float32, -bound, bound)
        b = jax.random.uniform(kb, (1, fan_out), jnp.float32, -bound, bound)
        params.append((w, b))
    return params


def prepare_params(params):
    """One-time prep (hoisted out of the forward call): zero-pad weights to
    lane-aligned shapes (bf16) and pack biases into a single (8, 256) f32 array."""
    ws_pad = []
    b_pack = jnp.zeros((BIAS_ROWS, BIAS_COLS), jnp.float32)
    for i, (w, b) in enumerate(params):
        in_p, out_p = PAD_DIMS[i]
        wp = jnp.zeros((in_p, out_p), jnp.float32)
        wp = wp.at[: w.shape[0], : w.shape[1]].set(w)
        ws_pad.append(wp.astype(jnp.bfloat16))
        b_pack = b_pack.at[i, : b.shape[1]].set(b[0])
    return tuple(ws_pad), b_pack


def _pick_tile(batch, tb_request):
    """Pick batch tile TB (multiple of 16 for bf16 sublane packing) and padded
    batch PB.  Guarantees >= 2 grid steps whenever batch >= 32 so v7x's two
    TensorCores both get work (harmless on v5e/v6e, which have one TC)."""
    pb_min = _round_up(batch, 16)
    tb = min(_round_up(tb_request, 16), pb_min)
    if tb == pb_min and pb_min >= 32:      # whole batch would be one tile -> split in 2
        tb = _round_up((pb_min + 1) // 2, 16)
    pb = _round_up(pb_min, tb)
    return tb, pb


@functools.partial(jax.jit, static_argnames=("tb_request",))
def _forward_impl(x, ws_pad, b_pack, *, tb_request):
    batch, feat = x.shape
    tb, pb = _pick_tile(batch, tb_request)

    # bf16 input stream, zero-padded to lane-dense (pb, 128).
    # TODO(synk): could pass the 12 real columns unpadded and pad in-kernel to cut
    # the x stream another ~10x; kept the HBM-side pad for robust lowering.
    xp = jnp.pad(x.astype(jnp.bfloat16), ((0, pb - batch), (0, IN_PAD - feat)))

    x_spec = pl.BlockSpec((tb, IN_PAD), lambda i: (i, 0))
    # Constant index_maps -> weights / biases stay resident in VMEM across the grid.
    w_specs = [pl.BlockSpec(w.shape, lambda i: (0, 0)) for w in ws_pad]
    b_spec = pl.BlockSpec((BIAS_ROWS, BIAS_COLS), lambda i: (0, 0))
    o_spec = pl.BlockSpec((tb, OUT_PAD), lambda i: (i, 0))

    out = pl.pallas_call(
        mlp_kernel,
        out_shape=jax.ShapeDtypeStruct((pb, OUT_PAD), jnp.bfloat16),
        grid=(pb // tb,),
        in_specs=[x_spec] + w_specs + [b_spec],
        out_specs=o_spec,
        compiler_params=pltpu.CompilerParams(
            dimension_semantics=("parallel",)),   # batch tiles across v7x's 2 TCs
    )(xp, *ws_pad, b_pack)

    return out[:batch, :NUM_CLASSES].astype(jnp.float32)


def mlp_forward(x, prepared_params, tb=512):
    """Forward pass.  `prepared_params` = prepare_params(params) (call once).
    `tb` = requested batch tile: 512 default (good everywhere); 1024 is fine on
    v6e/v7x for very large batches; 256-512 is the v5e sweet spot."""
    ws_pad, b_pack = prepared_params
    return _forward_impl(x, ws_pad, b_pack, tb_request=int(tb))


def mlp_reference(x, params):
    """Pure-JAX reference mirroring the kernel numerics (bf16 matmul inputs,
    f32 accumulation, bf16 final store)."""
    h = x.astype(jnp.float32)
    n = len(params)
    for i, (w, b) in enumerate(params):
        h = jnp.dot(h.astype(jnp.bfloat16), w.astype(jnp.bfloat16),
                    preferred_element_type=jnp.float32) + b
        if i < n - 1:
            h = jnp.maximum(h, 0.0)
    return h.astype(jnp.bfloat16).astype(jnp.float32)


if __name__ == "__main__":
    key = jax.random.PRNGKey(0)
    kx, kp, kx2 = jax.random.split(key, 3)

    params = init_params(kp)
    prepared = prepare_params(params)          # weight pad / bias pack done once

    # Small deterministic test (single batch tile).
    batch = 8
    x = jax.random.normal(kx, (batch, INPUT_SIZE), jnp.float32)
    out = jax.block_until_ready(mlp_forward(x, prepared))
    ref = mlp_reference(x, params)
    assert out.shape == (batch, NUM_CLASSES)
    assert jnp.allclose(out, ref, atol=1e-2, rtol=1e-2), (
        f"max abs err {jnp.max(jnp.abs(out - ref))}")

    # Multi-tile test (padded batch, grid >= 2) — exercises the pipelined grid path.
    batch2 = 300
    x2 = jax.random.normal(kx2, (batch2, INPUT_SIZE), jnp.float32)
    out2 = jax.block_until_ready(mlp_forward(x2, prepared))
    ref2 = mlp_reference(x2, params)
    assert out2.shape == (batch2, NUM_CLASSES)
    assert jnp.allclose(out2, ref2, atol=1e-2, rtol=1e-2), (
        f"max abs err {jnp.max(jnp.abs(out2 - ref2))}")

    # TODO(synk): Dropout(p=0.2) layers are identities in eval mode; a training-mode
    # variant would need pltpu.prng_seed/prng_random_bits masking inside the kernel.
    print("KERNEL_OK")
</pallas_src>

<mosaic_0001>
module attributes {stable_mosaic.version = 11 : i64} {
  func.func @mlp_kernel(%arg0: i32, %arg1: memref<16x128xbf16, #tpu.memory_space<vmem>>, %arg2: memref<128x128xbf16, #tpu.memory_space<vmem>>, %arg3: memref<128x128xbf16, #tpu.memory_space<vmem>>, %arg4: memref<128x256xbf16, #tpu.memory_space<vmem>>, %arg5: memref<256x256xbf16, #tpu.memory_space<vmem>>, %arg6: memref<256x128xbf16, #tpu.memory_space<vmem>>, %arg7: memref<128x128xbf16, #tpu.memory_space<vmem>>, %arg8: memref<128x128xbf16, #tpu.memory_space<vmem>>, %arg9: memref<8x256xf32, #tpu.memory_space<vmem>>, %arg10: memref<16x128xbf16, #tpu.memory_space<vmem>>) attributes {dimension_semantics = [#tpu.dimension_semantics<parallel>], iteration_bounds = array<i64: 1>, scalar_prefetch = 0 : i64, scratch_operands = 0 : i64, tpu.core_type = #tpu.core_type<tc>, window_params = [{transform_indices = @transform_0, window_bounds = array<i64: 16, 128>}, {pipeline_mode = #tpu.pipeline_mode<synchronous>, transform_indices = @transform_1, window_bounds = array<i64: 128, 128>}, {pipeline_mode = #tpu.pipeline_mode<synchronous>, transform_indices = @transform_2, window_bounds = array<i64: 128, 128>}, {pipeline_mode = #tpu.pipeline_mode<synchronous>, transform_indices = @transform_3, window_bounds = array<i64: 128, 256>}, {pipeline_mode = #tpu.pipeline_mode<synchronous>, transform_indices = @transform_4, window_bounds = array<i64: 256, 256>}, {pipeline_mode = #tpu.pipeline_mode<synchronous>, transform_indices = @transform_5, window_bounds = array<i64: 256, 128>}, {pipeline_mode = #tpu.pipeline_mode<synchronous>, transform_indices = @transform_6, window_bounds = array<i64: 128, 128>}, {pipeline_mode = #tpu.pipeline_mode<synchronous>, transform_indices = @transform_7, window_bounds = array<i64: 128, 128>}, {pipeline_mode = #tpu.pipeline_mode<synchronous>, transform_indices = @transform_8, window_bounds = array<i64: 8, 256>}, {transform_indices = @transform_9, window_bounds = array<i64: 16, 128>}]} {
    %c0 = arith.constant 0 : index
    %c0_0 = arith.constant 0 : index
    %0 = vector.load %arg1[%c0, %c0_0] : memref<16x128xbf16, #tpu.memory_space<vmem>>, vector<16x128xbf16>
    %c0_1 = arith.constant 0 : index
    %c0_2 = arith.constant 0 : index
    %1 = vector.load %arg2[%c0_1, %c0_2] : memref<128x128xbf16, #tpu.memory_space<vmem>>, vector<128x128xbf16>
    %cst = arith.constant dense<0.000000e+00> : vector<16x128xf32>
    %2 = tpu.matmul %0, %1, %cst {dimension_numbers = #tpu.dot_dimension_numbers<[1], [0], [0], [1], [0, 0, 1, 1], [], []>} : vector<16x128xbf16>, vector<128x128xbf16>, vector<16x128xf32> -> vector<16x128xf32>
    %c0_3 = arith.constant 0 : index
    %c0_4 = arith.constant 0 : index
    %3 = vector.load %arg9[%c0_3, %c0_4] : memref<8x256xf32, #tpu.memory_space<vmem>>, vector<1x128xf32>
    %4 = vector.broadcast %3 : vector<1x128xf32> to vector<16x128xf32>
    %5 = arith.addf %2, %4 : vector<16x128xf32>
    %cst_5 = arith.constant 0.000000e+00 : f32
    %6 = vector.broadcast %cst_5 : f32 to vector<16x128xf32>
    %7 = arith.maximumf %5, %6 : vector<16x128xf32>
    %8 = arith.truncf %7 : vector<16x128xf32> to vector<16x128xbf16>
    %c0_6 = arith.constant 0 : index
    %c0_7 = arith.constant 0 : index
    %9 = vector.load %arg3[%c0_6, %c0_7] : memref<128x128xbf16, #tpu.memory_space<vmem>>, vector<128x128xbf16>
    %cst_8 = arith.constant dense<0.000000e+00> : vector<16x128xf32>
    %10 = tpu.matmul %8, %9, %cst_8 {dimension_numbers = #tpu.dot_dimension_numbers<[1], [0], [0], [1], [0, 0, 1, 1], [], []>} : vector<16x128xbf16>, vector<128x128xbf16>, vector<16x128xf32> -> vector<16x128xf32>
    %c1 = arith.constant 1 : index
    %c0_9 = arith.constant 0 : index
    %11 = vector.load %arg9[%c1, %c0_9] : memref<8x256xf32, #tpu.memory_space<vmem>>, vector<1x128xf32>
    %12 = vector.broadcast %11 : vector<1x128xf32> to vector<16x128xf32>
    %13 = arith.addf %10, %12 : vector<16x128xf32>
    %cst_10 = arith.constant 0.000000e+00 : f32
    %14 = vector.broadcast %cst_10 : f32 to vector<16x128xf32>
    %15 = arith.maximumf %13, %14 : vector<16x128xf32>
    %16 = arith.truncf %15 : vector<16x128xf32> to vector<16x128xbf16>
    %c0_11 = arith.constant 0 : index
    %c0_12 = arith.constant 0 : index
    %17 = vector.load %arg4[%c0_11, %c0_12] : memref<128x256xbf16, #tpu.memory_space<vmem>>, vector<128x256xbf16>
    %cst_13 = arith.constant dense<0.000000e+00> : vector<16x256xf32>
    %18 = tpu.matmul %16, %17, %cst_13 {dimension_numbers = #tpu.dot_dimension_numbers<[1], [0], [0], [1], [0, 0, 1, 1], [], []>} : vector<16x128xbf16>, vector<128x256xbf16>, vector<16x256xf32> -> vector<16x256xf32>
    %c2 = arith.constant 2 : index
    %c0_14 = arith.constant 0 : index
    %19 = vector.load %arg9[%c2, %c0_14] : memref<8x256xf32, #tpu.memory_space<vmem>>, vector<1x256xf32>
    %20 = vector.broadcast %19 : vector<1x256xf32> to vector<16x256xf32>
    %21 = arith.addf %18, %20 : vector<16x256xf32>
    %cst_15 = arith.constant 0.000000e+00 : f32
    %22 = vector.broadcast %cst_15 : f32 to vector<16x256xf32>
    %23 = arith.maximumf %21, %22 : vector<16x256xf32>
    %24 = arith.truncf %23 : vector<16x256xf32> to vector<16x256xbf16>
    %c0_16 = arith.constant 0 : index
    %c0_17 = arith.constant 0 : index
    %25 = vector.load %arg5[%c0_16, %c0_17] : memref<256x256xbf16, #tpu.memory_space<vmem>>, vector<256x256xbf16>
    %cst_18 = arith.constant dense<0.000000e+00> : vector<16x256xf32>
    %26 = tpu.matmul %24, %25, %cst_18 {dimension_numbers = #tpu.dot_dimension_numbers<[1], [0], [0], [1], [0, 0, 1, 1], [], []>} : vector<16x256xbf16>, vector<256x256xbf16>, vector<16x256xf32> -> vector<16x256xf32>
    %c3 = arith.constant 3 : index
    %c0_19 = arith.constant 0 : index
    %27 = vector.load %arg9[%c3, %c0_19] : memref<8x256xf32, #tpu.memory_space<vmem>>, vector<1x256xf32>
    %28 = vector.broadcast %27 : vector<1x256xf32> to vector<16x256xf32>
    %29 = arith.addf %26, %28 : vector<16x256xf32>
    %cst_20 = arith.constant 0.000000e+00 : f32
    %30 = vector.broadcast %cst_20 : f32 to vector<16x256xf32>
    %31 = arith.maximumf %29, %30 : vector<16x256xf32>
    %32 = arith.truncf %31 : vector<16x256xf32> to vector<16x256xbf16>
    %c0_21 = arith.constant 0 : index
    %c0_22 = arith.constant 0 : index
    %33 = vector.load %arg6[%c0_21, %c0_22] : memref<256x128xbf16, #tpu.memory_space<vmem>>, vector<256x128xbf16>
    %cst_23 = arith.constant dense<0.000000e+00> : vector<16x128xf32>
    %34 = tpu.matmul %32, %33, %cst_23 {dimension_numbers = #tpu.dot_dimension_numbers<[1], [0], [0], [1], [0, 0, 1, 1], [], []>} : vector<16x256xbf16>, vector<256x128xbf16>, vector<16x128xf32> -> vector<16x128xf32>
    %c4 = arith.constant 4 : index
    %c0_24 = arith.constant 0 : index
    %35 = vector.load %arg9[%c4, %c0_24] : memref<8x256xf32, #tpu.memory_space<vmem>>, vector<1x128xf32>
    %36 = vector.broadcast %35 : vector<1x128xf32> to vector<16x128xf32>
    %37 = arith.addf %34, %36 : vector<16x128xf32>
    %cst_25 = arith.constant 0.000000e+00 : f32
    %38 = vector.broadcast %cst_25 : f32 to vector<16x128xf32>
    %39 = arith.maximumf %37, %38 : vector<16x128xf32>
    %40 = arith.truncf %39 : vector<16x128xf32> to vector<16x128xbf16>
    %c0_26 = arith.constant 0 : index
    %c0_27 = arith.constant 0 : index
    %41 = vector.load %arg7[%c0_26, %c0_27] : memref<128x128xbf16, #tpu.memory_space<vmem>>, vector<128x128xbf16>
    %cst_28 = arith.constant dense<0.000000e+00> : vector<16x128xf32>
    %42 = tpu.matmul %40, %41, %cst_28 {dimension_numbers = #tpu.dot_dimension_numbers<[1], [0], [0], [1], [0, 0, 1, 1], [], []>} : vector<16x128xbf16>, vector<128x128xbf16>, vector<16x128xf32> -> vector<16x128xf32>
    %c5 = arith.constant 5 : index
    %c0_29 = arith.constant 0 : index
    %43 = vector.load %arg9[%c5, %c0_29] : memref<8x256xf32, #tpu.memory_space<vmem>>, vector<1x128xf32>
    %44 = vector.broadcast %43 : vector<1x128xf32> to vector<16x128xf32>
    %45 = arith.addf %42, %44 : vector<16x128xf32>
    %cst_30 = arith.constant 0.000000e+00 : f32
    %46 = vector.broadcast %cst_30 : f32 to vector<16x128xf32>
    %47 = arith.maximumf %45, %46 : vector<16x128xf32>
    %48 = arith.truncf %47 : vector<16x128xf32> to vector<16x128xbf16>
    %c0_31 = arith.constant 0 : index
    %c0_32 = arith.constant 0 : index
    %49 = vector.load %arg8[%c0_31, %c0_32] : memref<128x128xbf16, #tpu.memory_space<vmem>>, vector<128x128xbf16>
    %cst_33 = arith.constant dense<0.000000e+00> : vector<16x128xf32>
    %50 = tpu.matmul %48, %49, %cst_33 {dimension_numbers = #tpu.dot_dimension_numbers<[1], [0], [0], [1], [0, 0, 1, 1], [], []>} : vector<16x128xbf16>, vector<128x128xbf16>, vector<16x128xf32> -> vector<16x128xf32>
    %c6 = arith.constant 6 : index
    %c0_34 = arith.constant 0 : index
    %51 = vector.load %arg9[%c6, %c0_34] : memref<8x256xf32, #tpu.memory_space<vmem>>, vector<1x128xf32>
    %52 = vector.broadcast %51 : vector<1x128xf32> to vector<16x128xf32>
    %53 = arith.addf %50, %52 : vector<16x128xf32>
    %54 = arith.truncf %53 : vector<16x128xf32> to vector<16x128xbf16>
    %c0_35 = arith.constant 0 : index
    %c0_36 = arith.constant 0 : index
    %55 = vector.load %arg10[%c0_35, %c0_36] : memref<16x128xbf16, #tpu.memory_space<vmem>>, vector<16x128xbf16>
    tpu.vector_store %arg10[%c0_35, %c0_36], %54 {strides = array<i32>} : memref<16x128xbf16, #tpu.memory_space<vmem>>, vector<16x128xbf16>,
    return
  }
  func.func @transform_0(%arg0: i32) -> (i32, i32) {
    %c0_i32 = arith.constant 0 : i32
    %c0_i32_0 = arith.constant 0 : i32
    return %arg0, %c0_i32 : i32, i32
  }
  func.func @transform_1(%arg0: i32) -> (i32, i32) {
    %c0_i32 = arith.constant 0 : i32
    %c0_i32_0 = arith.constant 0 : i32
    %c0_i32_1 = arith.constant 0 : i32
    return %c0_i32, %c0_i32_0 : i32, i32
  }
  func.func @transform_2(%arg0: i32) -> (i32, i32) {
    %c0_i32 = arith.constant 0 : i32
    %c0_i32_0 = arith.constant 0 : i32
    %c0_i32_1 = arith.constant 0 : i32
    return %c0_i32, %c0_i32_0 : i32, i32
  }
  func.func @transform_3(%arg0: i32) -> (i32, i32) {
    %c0_i32 = arith.constant 0 : i32
    %c0_i32_0 = arith.constant 0 : i32
    %c0_i32_1 = arith.constant 0 : i32
    return %c0_i32, %c0_i32_0 : i32, i32
  }
  func.func @transform_4(%arg0: i32) -> (i32, i32) {
    %c0_i32 = arith.constant 0 : i32
    %c0_i32_0 = arith.constant 0 : i32
    %c0_i32_1 = arith.constant 0 : i32
    return %c0_i32, %c0_i32_0 : i32, i32
  }
  func.func @transform_5(%arg0: i32) -> (i32, i32) {
    %c0_i32 = arith.constant 0 : i32
    %c0_i32_0 = arith.constant 0 : i32
    %c0_i32_1 = arith.constant 0 : i32
    return %c0_i32, %c0_i32_0 : i32, i32
  }
  func.func @transform_6(%arg0: i32) -> (i32, i32) {
    %c0_i32 = arith.constant 0 : i32
    %c0_i32_0 = arith.constant 0 : i32
    %c0_i32_1 = arith.constant 0 : i32
    return %c0_i32, %c0_i32_0 : i32, i32
  }
  func.func @transform_7(%arg0: i32) -> (i32, i32) {
    %c0_i32 = arith.constant 0 : i32
    %c0_i32_0 = arith.constant 0 : i32
    %c0_i32_1 = arith.constant 0 : i32
    return %c0_i32, %c0_i32_0 : i32, i32
  }
  func.func @transform_8(%arg0: i32) -> (i32, i32) {
    %c0_i32 = arith.constant 0 : i32
    %c0_i32_0 = arith.constant 0 : i32
    %c0_i32_1 = arith.constant 0 : i32
    return %c0_i32, %c0_i32_0 : i32, i32
  }
  func.func @transform_9(%arg0: i32) -> (i32, i32) {
    %c0_i32 = arith.constant 0 : i32
    %c0_i32_0 = arith.constant 0 : i32
    return %arg0, %c0_i32 : i32, i32
  }
}

</mosaic_0001>

<llo_original>
// kernel: _forward_impl.1
$region0: #{_forward_impl.1}
  #allocation0 [shape = 'u32[]', space=smem, size = 0x4, offset = 0x4, fixed_abs, tag = 'smem constant byte address 0x4 - core index']
  #allocation1 [shape = 'u32[144,128]{1,0:T(1,128)}', space=vmem, size = 0x12000, scoped, tag = 'internal scratch']
  %s0 = inlined_call_operand.vmem [shape: bf16[16,128], index: 0, kind: input, shape index: {}]
  %s1 = inlined_call_operand.hbm [shape: bf16[128,128], index: 1, kind: input, shape index: {}]
  %s2 = inlined_call_operand.hbm [shape: bf16[128,128], index: 2, kind: input, shape index: {}]
  %s3 = inlined_call_operand.hbm [shape: bf16[128,256], index: 3, kind: input, shape index: {}]
  %s4 = inlined_call_operand.hbm [shape: bf16[256,256], index: 4, kind: input, shape index: {}]
  %s5 = inlined_call_operand.hbm [shape: bf16[256,128], index: 5, kind: input, shape index: {}]
  %s6 = inlined_call_operand.hbm [shape: bf16[128,128], index: 6, kind: input, shape index: {}]
  %s7 = inlined_call_operand.hbm [shape: bf16[128,128], index: 7, kind: input, shape index: {}]
  %s8 = inlined_call_operand.vmem [shape: f32[8,256], index: 8, kind: input, shape index: {}]
  %s9 = inlined_call_operand.vmem [shape: bf16[16,128], index: 9, kind: output, shape index: {}]
  %s10 = sld [smem:[#allocation0]]
  $region74: #{_forward_impl.1} parent=0
    _
  %s12 = ssub.s32 1, %s10
  %s13 = scalar_select 0, %s12, %s10
  $region1: #{_forward_impl.1} parent=0
    #allocation2 [shape = 'u8[32768]{0}', space=vmem, size = 0x8000, scoped, tag = 'input window, operand 1, single buffered']
    #allocation3 [shape = 's32[1]{0}', space=sflag, size = 0x4, scoped, tag = 'scoped memory for _forward_impl.1']
    #allocation4 [shape = 'u8[32768]{0}', space=vmem, size = 0x8000, scoped, tag = 'input window, operand 2, single buffered']
    #allocation5 [shape = 's32[1]{0}', space=sflag, size = 0x4, scoped, tag = 'scoped memory for _forward_impl.1']
    #allocation6 [shape = 'u8[65536]{0}', space=vmem, size = 0x10000, scoped, tag = 'input window, operand 3, single buffered']
    #allocation7 [shape = 'u8[131072]{0}', space=vmem, size = 0x20000, scoped, tag = 'input window, operand 4, single buffered']
    #allocation8 [shape = 's32[1]{0}', space=sflag, size = 0x4, scoped, tag = 'scoped memory for _forward_impl.1']
    #allocation9 [shape = 'u8[65536]{0}', space=vmem, size = 0x10000, scoped, tag = 'input window, operand 5, single buffered']
    #allocation10 [shape = 'u8[32768]{0}', space=vmem, size = 0x8000, scoped, tag = 'input window, operand 6, single buffered']
    #allocation11 [shape = 's32[1]{0}', space=sflag, size = 0x4, scoped, tag = 'scoped memory for _forward_impl.1']
    #allocation12 [shape = 'u8[32768]{0}', space=vmem, size = 0x8000, scoped, tag = 'input window, operand 7, single buffered']
    %14 = vsyncpa [#allocation3], 0
    %15 = vsyncpa [#allocation5], 0
    %16 = vsyncpa [#allocation8], 0
    %17 = vsyncpa [#allocation11], 0
    // Predicated region
    $region2: #{_forward_impl.1} parent=1 // pred_check
      _
    $region3: #{_forward_impl.1} parent=1 // pred_check_branch
      %19 = sbr.rel (0) target = $region5
    $region4: #{_forward_impl.1} parent=1 // pred_region
      _
    $region5: #{_forward_impl.1} parent=1 // pred_fallthru
      _
    // Predicated region
    $region6: #{_forward_impl.1} parent=1 // pred_check
      _
    $region7: #{_forward_impl.1} parent=1 // pred_check_branch
      %21 = sbr.rel (0) target = $region9
    $region8: #{_forward_impl.1} parent=1 // pred_region
      %s23 = ssub.s32 1024, 1024
      %24 = vsyncadd [#allocation3], %s23
      %s25 = sshll.u32 [#allocation2], 4
      %s26 = int_to_ptr.vmem [resolvable:$true] %s25
      %31 = dma.hbm_to_vmem [thread:$0]  %s1, 1024, %s26, [#allocation3], 64, 64, 4
    $region9: #{_forward_impl.1} parent=1 // pred_fallthru
      _
    // Predicated region
    $region10: #{_forward_impl.1} parent=1 // pred_check
      _
    $region11: #{_forward_impl.1} parent=1 // pred_check_branch
      %33 = sbr.rel (0) target = $region13
    $region12: #{_forward_impl.1} parent=1 // pred_region
      %s35 = ssub.s32 1024, 1024
      %36 = vsyncadd [#allocation5], %s35
      %s37 = sshll.u32 [#allocation4], 4
      %s38 = int_to_ptr.vmem [resolvable:$true] %s37
      %43 = dma.hbm_to_vmem [thread:$0]  %s2, 1024, %s38, [#allocation5], 64, 64, 4
    $region13: #{_forward_impl.1} parent=1 // pred_fallthru
      _
    // Predicated region
    $region14: #{_forward_impl.1} parent=1 // pred_check
      _
    $region15: #{_forward_impl.1} parent=1 // pred_check_branch
      %45 = sbr.rel (0) target = $region17
    $region16: #{_forward_impl.1} parent=1 // pred_region
      %s47 = ssub.s32 2048, 2048
      %48 = vsyncadd [#allocation5], %s47
      %s49 = sshll.u32 [#allocation6], 4
      %s50 = int_to_ptr.vmem [resolvable:$true] %s49
      %55 = dma.hbm_to_vmem [thread:$0]  %s3, 2048, %s50, [#allocation5], 128, 128, 8
    $region17: #{_forward_impl.1} parent=1 // pred_fallthru
      _
    // Predicated region
    $region18: #{_forward_impl.1} parent=1 // pred_check
      _
    $region19: #{_forward_impl.1} parent=1 // pred_check_branch
      %57 = sbr.rel (0) target = $region21
    $region20: #{_forward_impl.1} parent=1 // pred_region
      %s59 = ssub.s32 4096, 4096
      %60 = vsyncadd [#allocation8], %s59
      %s61 = sshll.u32 [#allocation7], 4
      %s62 = int_to_ptr.vmem [resolvable:$true] %s61
      %67 = dma.hbm_to_vmem [thread:$0]  %s4, 4096, %s62, [#allocation8], 128, 128, 8
    $region21: #{_forward_impl.1} parent=1 // pred_fallthru
      _
    // Predicated region
    $region22: #{_forward_impl.1} parent=1 // pred_check
      _
    $region23: #{_forward_impl.1} parent=1 // pred_check_branch
      %69 = sbr.rel (0) target = $region25
    $region24: #{_forward_impl.1} parent=1 // pred_region
      %s71 = ssub.s32 2048, 2048
      %72 = vsyncadd [#allocation8], %s71
      %s73 = sshll.u32 [#allocation9], 4
      %s74 = int_to_ptr.vmem [resolvable:$true] %s73
      %79 = dma.hbm_to_vmem [thread:$0]  %s5, 2048, %s74, [#allocation8], 64, 64, 4
    $region25: #{_forward_impl.1} parent=1 // pred_fallthru
      _
    // Predicated region
    $region26: #{_forward_impl.1} parent=1 // pred_check
      _
    $region27: #{_forward_impl.1} parent=1 // pred_check_branch
      %81 = sbr.rel (0) target = $region29
    $region28: #{_forward_impl.1} parent=1 // pred_region
      %s83 = ssub.s32 1024, 1024
      %84 = vsyncadd [#allocation11], %s83
      %s85 = sshll.u32 [#allocation10], 4
      %s86 = int_to_ptr.vmem [resolvable:$true] %s85
      %91 = dma.hbm_to_vmem [thread:$0]  %s6, 1024, %s86, [#allocation11], 64, 64, 4
    $region29: #{_forward_impl.1} parent=1 // pred_fallthru
      _
    // Predicated region
    $region30: #{_forward_impl.1} parent=1 // pred_check
      _
    $region31: #{_forward_impl.1} parent=1 // pred_check_branch
      %93 = sbr.rel (0) target = $region33
    $region32: #{_forward_impl.1} parent=1 // pred_region
      %s95 = ssub.s32 1024, 1024
      %96 = vsyncadd [#allocation11], %s95
      %s97 = sshll.u32 [#allocation12], 4
      %s98 = int_to_ptr.vmem [resolvable:$true] %s97
      %103 = dma.hbm_to_vmem [thread:$0]  %s7, 1024, %s98, [#allocation11], 64, 64, 4
    $region33: #{_forward_impl.1} parent=1 // pred_fallthru
      _
    // Predicated region
    $region34: #{_forward_impl.1} parent=1 // pred_check
      _
    $region35: #{_forward_impl.1} parent=1 // pred_check_branch
      %105 = sbr.rel (0) target = $region37
    $region36: #{_forward_impl.1} parent=1 // pred_region
      _
    $region37: #{_forward_impl.1} parent=1 // pred_fallthru
      _
    // Predicated region
    $region38: #{_forward_impl.1} parent=1 // pred_check
      _
    $region39: #{_forward_impl.1} parent=1 // pred_check_branch
      %107 = sbr.rel (0) target = $region41
    $region40: #{_forward_impl.1} parent=1 // pred_region
      %108 = dma.done [#allocation3], 1024
    $region41: #{_forward_impl.1} parent=1 // pred_fallthru
      _
    // Predicated region
    $region42: #{_forward_impl.1} parent=1 // pred_check
      _
    $region43: #{_forward_impl.1} parent=1 // pred_check_branch
      %110 = sbr.rel (0) target = $region45
    $region44: #{_forward_impl.1} parent=1 // pred_region
      %111 = dma.done [#allocation5], 1024
    $region45: #{_forward_impl.1} parent=1 // pred_fallthru
      _
    // Predicated region
    $region46: #{_forward_impl.1} parent=1 // pred_check
      _
    $region47: #{_forward_impl.1} parent=1 // pred_check_branch
      %113 = sbr.rel (0) target = $region49
    $region48: #{_forward_impl.1} parent=1 // pred_region
      %114 = dma.done [#allocation5], 2048
    $region49: #{_forward_impl.1} parent=1 // pred_fallthru
      _
    // Predicated region
    $region50: #{_forward_impl.1} parent=1 // pred_check
      _
    $region51: #{_forward_impl.1} parent=1 // pred_check_branch
      %116 = sbr.rel (0) target = $region53
    $region52: #{_forward_impl.1} parent=1 // pred_region
      %117 = dma.done [#allocation8], 4096
    $region53: #{_forward_impl.1} parent=1 // pred_fallthru
      _
    // Predicated region
    $region54: #{_forward_impl.1} parent=1 // pred_check
      _
    $region55: #{_forward_impl.1} parent=1 // pred_check_branch
      %119 = sbr.rel (0) target = $region57
    $region56: #{_forward_impl.1} parent=1 // pred_region
      %120 = dma.done [#allocation8], 2048
    $region57: #{_forward_impl.1} parent=1 // pred_fallthru
      _
    // Predicated region
    $region58: #{_forward_impl.1} parent=1 // pred_check
      _
    $region59: #{_forward_impl.1} parent=1 // pred_check_branch
      %122 = sbr.rel (0) target = $region61
    $region60: #{_forward_impl.1} parent=1 // pred_region
      %123 = dma.done [#allocation11], 1024
    $region61: #{_forward_impl.1} parent=1 // pred_fallthru
      _
    // Predicated region
    $region62: #{_forward_impl.1} parent=1 // pred_check
      _
    $region63: #{_forward_impl.1} parent=1 // pred_check_branch
      %125 = sbr.rel (0) target = $region65
    $region64: #{_forward_impl.1} parent=1 // pred_region
      %126 = dma.done [#allocation11], 1024
    $region65: #{_forward_impl.1} parent=1 // pred_fallthru
      _
    %v128 = vld [vmem:[%s0] sm:$0xf]
    %v129 = vld [vmem:[%s0 + $0x4] sm:$0xf]
    %v130 = vld [vmem:[#allocation2] sm:$0xf]
    %v131 = vld [vmem:[#allocation2 + $0x4] sm:$0xf]
    %v132 = vld [vmem:[#allocation2 + $0x8] sm:$0xf]
    %v133 = vld [vmem:[#allocation2 + $0xc] sm:$0xf]
    %v134 = vld [vmem:[#allocation2 + $0x10] sm:$0xf]
    %v135 = vld [vmem:[#allocation2 + $0x14] sm:$0xf]
    %v136 = vld [vmem:[#allocation2 + $0x18] sm:$0xf]
    %v137 = vld [vmem:[#allocation2 + $0x1c] sm:$0xf]
    %v138 = vld [vmem:[#allocation2 + $0x20] sm:$0xf]
    %v139 = vld [vmem:[#allocation2 + $0x24] sm:$0xf]
    %v140 = vld [vmem:[#allocation2 + $0x28] sm:$0xf]
    %v141 = vld [vmem:[#allocation2 + $0x2c] sm:$0xf]
    %v142 = vld [vmem:[#allocation2 + $0x30] sm:$0xf]
    %v143 = vld [vmem:[#allocation2 + $0x34] sm:$0xf]
    %v144 = vld [vmem:[#allocation2 + $0x38] sm:$0xf]
    %v145 = vld [vmem:[#allocation2 + $0x3c] sm:$0xf]
    %v146 = vld [vmem:[%s8] ss:$0 sm:$0xff]
    %v149 = vunpack.c.l.b16 %v128
    %v150 = vunpack.c.l.b16 %v129
    %v151 = vpack.c.b16 %v150, %v149
    %v169 = vunpack.c.l.b16 %v130
    %v170 = vunpack.c.l.b16 %v131
    %v171 = vunpack.c.l.b16 %v132
    %v172 = vunpack.c.l.b16 %v133
    %v173 = vunpack.c.l.b16 %v134
    %v174 = vunpack.c.l.b16 %v135
    %v175 = vunpack.c.l.b16 %v136
    %v176 = vunpack.c.l.b16 %v137
    %v177 = vunpack.c.l.b16 %v138
    %v178 = vunpack.c.l.b16 %v139
    %v179 = vunpack.c.l.b16 %v140
    %v180 = vunpack.c.l.b16 %v141
    %v181 = vunpack.c.l.b16 %v142
    %v182 = vunpack.c.l.b16 %v143
    %v183 = vunpack.c.l.b16 %v144
    %v184 = vunpack.c.l.b16 %v145
    %v185 = vpack.c.b16 %v170, %v169
    %v186 = vpack.c.b16 %v172, %v171
    %v187 = vpack.c.b16 %v174, %v173
    %v188 = vpack.c.b16 %v176, %v175
    %v189 = vpack.c.b16 %v178, %v177
    %v190 = vpack.c.b16 %v180, %v179
    %v191 = vpack.c.b16 %v182, %v181
    %v192 = vpack.c.b16 %v184, %v183
    %201 = vmatprep.subr.bf16.mxu0 0
    %202 = vmatpush1.bf16.msra.mxu0 %v185
    %203 = vmatprep.subr.bf16.mxu0 0
    %204 = vmatpush1.bf16.msra.mxu0 %v186
    %205 = vmatprep.subr.bf16.mxu0 0
    %206 = vmatpush1.bf16.msra.mxu0 %v187
    %207 = vmatprep.subr.bf16.mxu0 0
    %208 = vmatpush1.bf16.msra.mxu0 %v188
    %209 = vmatprep.subr.bf16.mxu0 0
    %210 = vmatpush1.bf16.msra.mxu0 %v189
    %211 = vmatprep.subr.bf16.mxu0 0
    %212 = vmatpush1.bf16.msra.mxu0 %v190
    %213 = vmatprep.subr.bf16.mxu0 0
    %214 = vmatpush1.bf16.msra.mxu0 %v191
    %215 = vmatprep.subr.bf16.mxu0 0
    %216 = vmatpush1.bf16.msra.mxu0 %v192
    %217 = vmatprep.subr.bf16.mxu0 0
    %218 = vmatpush1.bf16.msra.mxu0 0
    %219 = vmatprep.subr.bf16.mxu0 0
    %220 = vmatpush1.bf16.msra.mxu0 0
    %221 = vmatprep.subr.bf16.mxu0 0
    %222 = vmatpush1.bf16.msra.mxu0 0
    %223 = vmatprep.subr.bf16.mxu0 0
    %224 = vmatpush1.bf16.msra.mxu0 0
    %225 = vmatprep.subr.bf16.mxu0 0
    %226 = vmatpush1.bf16.msra.mxu0 0
    %227 = vmatprep.subr.bf16.mxu0 0
    %228 = vmatpush1.bf16.msra.mxu0 0
    %229 = vmatprep.subr.bf16.mxu0 0
    %230 = vmatpush1.bf16.msra.mxu0 0
    %231 = vmatprep.subr.bf16.mxu0 0
    %232 = vmatpush1.bf16.msra.mxu0 0
    %233 = vmatprep.mubr.bf16.mxu0 0
    %234 = vmatmul.mubr.bf16.gmra.mrb[0].mxu0 %v151
    %v235 = vpop.f32.mrb[0].mxu0
    %v236 = vadd.f32 %v146, %v235
    %v237 = vpop.f32.mrb[0].mxu0
    %v238 = vpop.f32.mrb[0].mxu0
    %v239 = vadd.f32 %v146, %v238
    %v240 = vpop.f32.mrb[0].mxu0
    %241 = vdwg.mxu0
    %v242 = vmax.f32 %v236, 0.0
    %v243 = vmax.f32 %v239, 0.0
    %v244 = vpack.c.bf16 %v243, %v242
    %v245 = vld [vmem:[#allocation4] sm:$0xf]
    %v246 = vld [vmem:[#allocation4 + $0x4] sm:$0xf]
    %v247 = vld [vmem:[#allocation4 + $0x8] sm:$0xf]
    %v248 = vld [vmem:[#allocation4 + $0xc] sm:$0xf]
    %v249 = vld [vmem:[#allocation4 + $0x10] sm:$0xf]
    %v250 = vld [vmem:[#allocation4 + $0x14] sm:$0xf]
    %v251 = vld [vmem:[#allocation4 + $0x18] sm:$0xf]
    %v252 = vld [vmem:[#allocation4 + $0x1c] sm:$0xf]
    %v253 = vld [vmem:[#allocation4 + $0x20] sm:$0xf]
    %v254 = vld [vmem:[#allocation4 + $0x24] sm:$0xf]
    %v255 = vld [vmem:[#allocation4 + $0x28] sm:$0xf]
    %v256 = vld [vmem:[#allocation4 + $0x2c] sm:$0xf]
    %v257 = vld [vmem:[#allocation4 + $0x30] sm:$0xf]
    %v258 = vld [vmem:[#allocation4 + $0x34] sm:$0xf]
    %v259 = vld [vmem:[#allocation4 + $0x38] sm:$0xf]
    %v260 = vld [vmem:[#allocation4 + $0x3c] sm:$0xf]
    %v261 = vld [vmem:[%s8 + $0x1] ss:$0 sm:$0xff]
    %v278 = vunpack.c.l.b16 %v245
    %v279 = vunpack.c.l.b16 %v246
    %v280 = vunpack.c.l.b16 %v247
    %v281 = vunpack.c.l.b16 %v248
    %v282 = vunpack.c.l.b16 %v249
    %v283 = vunpack.c.l.b16 %v250
    %v284 = vunpack.c.l.b16 %v251
    %v285 = vunpack.c.l.b16 %v252
    %v286 = vunpack.c.l.b16 %v253
    %v287 = vunpack.c.l.b16 %v254
    %v288 = vunpack.c.l.b16 %v255
    %v289 = vunpack.c.l.b16 %v256
    %v290 = vunpack.c.l.b16 %v257
    %v291 = vunpack.c.l.b16 %v258
    %v292 = vunpack.c.l.b16 %v259
    %v293 = vunpack.c.l.b16 %v260
    %v294 = vpack.c.b16 %v279, %v278
    %v295 = vpack.c.b16 %v281, %v280
    %v296 = vpack.c.b16 %v283, %v282
    %v297 = vpack.c.b16 %v285, %v284
    %v298 = vpack.c.b16 %v287, %v286
    %v299 = vpack.c.b16 %v289, %v288
    %v300 = vpack.c.b16 %v291, %v290
    %v301 = vpack.c.b16 %v293, %v292
    %310 = vmatprep.subr.bf16.mxu0 0
    %311 = vmatpush1.bf16.msra.mxu0 %v294
    %312 = vmatprep.subr.bf16.mxu0 0
    %313 = vmatpush1.bf16.msra.mxu0 %v295
    %314 = vmatprep.subr.bf16.mxu0 0
    %315 = vmatpush1.bf16.msra.mxu0 %v296
    %316 = vmatprep.subr.bf16.mxu0 0
    %317 = vmatpush1.bf16.msra.mxu0 %v297
    %318 = vmatprep.subr.bf16.mxu0 0
    %319 = vmatpush1.bf16.msra.mxu0 %v298
    %320 = vmatprep.subr.bf16.mxu0 0
    %321 = vmatpush1.bf16.msra.mxu0 %v299
    %322 = vmatprep.subr.bf16.mxu0 0
    %323 = vmatpush1.bf16.msra.mxu0 %v300
    %324 = vmatprep.subr.bf16.mxu0 0
    %325 = vmatpush1.bf16.msra.mxu0 %v301
    %326 = vmatprep.subr.bf16.mxu0 0
    %327 = vmatpush1.bf16.msra.mxu0 0
    %328 = vmatprep.subr.bf16.mxu0 0
    %329 = vmatpush1.bf16.msra.mxu0 0
    %330 = vmatprep.subr.bf16.mxu0 0
    %331 = vmatpush1.bf16.msra.mxu0 0
    %332 = vmatprep.subr.bf16.mxu0 0
    %333 = vmatpush1.bf16.msra.mxu0 0
    %334 = vmatprep.subr.bf16.mxu0 0
    %335 = vmatpush1.bf16.msra.mxu0 0
    %336 = vmatprep.subr.bf16.mxu0 0
    %337 = vmatpush1.bf16.msra.mxu0 0
    %338 = vmatprep.subr.bf16.mxu0 0
    %339 = vmatpush1.bf16.msra.mxu0 0
    %340 = vmatprep.subr.bf16.mxu0 0
    %341 = vmatpush1.bf16.msra.mxu0 0
    %342 = vmatprep.mubr.bf16.mxu0 0
    %343 = vmatmul.mubr.bf16.gmra.mrb[0].mxu0 %v244
    %v344 = vpop.f32.mrb[0].mxu0
    %v345 = vadd.f32 %v261, %v344
    %v346 = vpop.f32.mrb[0].mxu0
    %v347 = vpop.f32.mrb[0].mxu0
    %v348 = vadd.f32 %v261, %v347
    %v349 = vpop.f32.mrb[0].mxu0
    %350 = vdwg.mxu0
    %v351 = vmax.f32 %v345, 0.0
    %v352 = vmax.f32 %v348, 0.0
    %v353 = vpack.c.bf16 %v352, %v351
    %v354 = vld [vmem:[#allocation6] sm:$0xff]
    %v355 = vld [vmem:[#allocation6 + $0x8] sm:$0xff]
    %v356 = vld [vmem:[#allocation6 + $0x10] sm:$0xff]
    %v357 = vld [vmem:[#allocation6 + $0x18] sm:$0xff]
    %v358 = vld [vmem:[#allocation6 + $0x20] sm:$0xff]
    %v359 = vld [vmem:[#allocation6 + $0x28] sm:$0xff]
    %v360 = vld [vmem:[#allocation6 + $0x30] sm:$0xff]
    %v361 = vld [vmem:[#allocation6 + $0x38] sm:$0xff]
    %v362 = vld [vmem:[#allocation6 + $0x40] sm:$0xff]
    %v363 = vld [vmem:[#allocation6 + $0x48] sm:$0xff]
    %v364 = vld [vmem:[#allocation6 + $0x50] sm:$0xff]
    %v365 = vld [vmem:[#allocation6 + $0x58] sm:$0xff]
    %v366 = vld [vmem:[#allocation6 + $0x60] sm:$0xff]
    %v367 = vld [vmem:[#allocation6 + $0x68] sm:$0xff]
    %v368 = vld [vmem:[#allocation6 + $0x70] sm:$0xff]
    %v369 = vld [vmem:[#allocation6 + $0x78] sm:$0xff]
    %s370 = scalar_lea.vmem %s8, 2
    %v371 = vld [vmem:[%s370] ss:$8 sm:$0x3]
    %v373 = vlaneseq
    %v374 = vshrl.u32 %v373, 7
    %v375 = vsub.s32 0, %v374
    %v376 = vrot.slane %v371, %v375
    %v377 = vlaneseq
    %v378 = vshrl.u32 %v377, 7
    %v379 = vsub.s32 1, %v378
    %v380 = vrot.slane %v371, %v379
    %v399 = vunpack.c.l.b16 %v354
    %v400 = vunpack.c.h.b16 %v354
    %v401 = vunpack.c.l.b16 %v355
    %v402 = vunpack.c.h.b16 %v355
    %v403 = vunpack.c.l.b16 %v356
    %v404 = vunpack.c.h.b16 %v356
    %v405 = vunpack.c.l.b16 %v357
    %v406 = vunpack.c.h.b16 %v357
    %v407 = vunpack.c.l.b16 %v358
    %v408 = vunpack.c.h.b16 %v358
    %v409 = vunpack.c.l.b16 %v359
    %v410 = vunpack.c.h.b16 %v359
    %v411 = vunpack.c.l.b16 %v360
    %v412 = vunpack.c.h.b16 %v360
    %v413 = vunpack.c.l.b16 %v361
    %v414 = vunpack.c.h.b16 %v361
    %v415 = vunpack.c.l.b16 %v362
    %v416 = vunpack.c.h.b16 %v362
    %v417 = vunpack.c.l.b16 %v363
    %v418 = vunpack.c.h.b16 %v363
    %v419 = vunpack.c.l.b16 %v364
    %v420 = vunpack.c.h.b16 %v364
    %v421 = vunpack.c.l.b16 %v365
    %v422 = vunpack.c.h.b16 %v365
    %v423 = vunpack.c.l.b16 %v366
    %v424 = vunpack.c.h.b16 %v366
    %v425 = vunpack.c.l.b16 %v367
    %v426 = vunpack.c.h.b16 %v367
    %v427 = vunpack.c.l.b16 %v368
    %v428 = vunpack.c.h.b16 %v368
    %v429 = vunpack.c.l.b16 %v369
    %v430 = vunpack.c.h.b16 %v369
    %v431 = vpack.c.b16 %v401, %v399
    %v432 = vpack.c.b16 %v402, %v400
    %v433 = vpack.c.b16 %v405, %v403
    %v434 = vpack.c.b16 %v406, %v404
    %v435 = vpack.c.b16 %v409, %v407
    %v436 = vpack.c.b16 %v410, %v408
    %v437 = vpack.c.b16 %v413, %v411
    %v438 = vpack.c.b16 %v414, %v412
    %v439 = vpack.c.b16 %v417, %v415
    %v440 = vpack.c.b16 %v418, %v416
    %v441 = vpack.c.b16 %v421, %v419
    %v442 = vpack.c.b16 %v422, %v420
    %v443 = vpack.c.b16 %v425, %v423
    %v444 = vpack.c.b16 %v426, %v424
    %v445 = vpack.c.b16 %v429, %v427
    %v446 = vpack.c.b16 %v430, %v428
    %463 = vmatprep.subr.bf16.mxu0 %v432
    %464 = vmatpush1.bf16.msra.mxu0 %v431
    %465 = vmatprep.subr.bf16.mxu0 %v434
    %466 = vmatpush1.bf16.msra.mxu0 %v433
    %467 = vmatprep.subr.bf16.mxu0 %v436
    %468 = vmatpush1.bf16.msra.mxu0 %v435
    %469 = vmatprep.subr.bf16.mxu0 %v438
    %470 = vmatpush1.bf16.msra.mxu0 %v437
    %471 = vmatprep.subr.bf16.mxu0 %v440
    %472 = vmatpush1.bf16.msra.mxu0 %v439
    %473 = vmatprep.subr.bf16.mxu0 %v442
    %474 = vmatpush1.bf16.msra.mxu0 %v441
    %475 = vmatprep.subr.bf16.mxu0 %v444
    %476 = vmatpush1.bf16.msra.mxu0 %v443
    %477 = vmatprep.subr.bf16.mxu0 %v446
    %478 = vmatpush1.bf16.msra.mxu0 %v445
    %479 = vmatprep.subr.bf16.mxu0 0
    %480 = vmatpush1.bf16.msra.mxu0 0
    %481 = vmatprep.subr.bf16.mxu0 0
    %482 = vmatpush1.bf16.msra.mxu0 0
    %483 = vmatprep.subr.bf16.mxu0 0
    %484 = vmatpush1.bf16.msra.mxu0 0
    %485 = vmatprep.subr.bf16.mxu0 0
    %486 = vmatpush1.bf16.msra.mxu0 0
    %487 = vmatprep.subr.bf16.mxu0 0
    %488 = vmatpush1.bf16.msra.mxu0 0
    %489 = vmatprep.subr.bf16.mxu0 0
    %490 = vmatpush1.bf16.msra.mxu0 0
    %491 = vmatprep.subr.bf16.mxu0 0
    %492 = vmatpush1.bf16.msra.mxu0 0
    %493 = vmatprep.subr.bf16.mxu0 0
    %494 = vmatpush1.bf16.msra.mxu0 0
    %495 = vmatprep.mubr.bf16.mxu0 0
    %496 = vmatmul.mubr.bf16.gmra.mrb[0].mxu0 %v353
    %v497 = vpop.f32.mrb[0].mxu0
    %v498 = vadd.f32 %v376, %v497
    %v499 = vpop.f32.mrb[0].mxu0
    %v500 = vadd.f32 %v380, %v499
    %v501 = vpop.f32.mrb[0].mxu0
    %v502 = vadd.f32 %v376, %v501
    %v503 = vpop.f32.mrb[0].mxu0
    %v504 = vadd.f32 %v380, %v503
    %505 = vdwg.mxu0
    %v506 = vmax.f32 %v498, 0.0
    %v507 = vmax.f32 %v500, 0.0
    %v508 = vmax.f32 %v502, 0.0
    %v509 = vmax.f32 %v504, 0.0
    %v510 = vpack.c.bf16 %v508, %v506
    %v511 = vpack.c.bf16 %v509, %v507
    %v512 = vld [vmem:[#allocation7] sm:$0xff]
    %v513 = vld [vmem:[#allocation7 + $0x8] sm:$0xff]
    %v514 = vld [vmem:[#allocation7 + $0x10] sm:$0xff]
    %v515 = vld [vmem:[#allocation7 + $0x18] sm:$0xff]
    %v516 = vld [vmem:[#allocation7 + $0x20] sm:$0xff]
    %v517 = vld [vmem:[#allocation7 + $0x28] sm:$0xff]
    %v518 = vld [vmem:[#allocation7 + $0x30] sm:$0xff]
    %v519 = vld [vmem:[#allocation7 + $0x38] sm:$0xff]
    %v520 = vld [vmem:[#allocation7 + $0x40] sm:$0xff]
    %v521 = vld [vmem:[#allocation7 + $0x48] sm:$0xff]
    %v522 = vld [vmem:[#allocation7 + $0x50] sm:$0xff]
    %v523 = vld [vmem:[#allocation7 + $0x58] sm:$0xff]
    %v524 = vld [vmem:[#allocation7 + $0x60] sm:$0xff]
    %v525 = vld [vmem:[#allocation7 + $0x68] sm:$0xff]
    %v526 = vld [vmem:[#allocation7 + $0x70] sm:$0xff]
    %v527 = vld [vmem:[#allocation7 + $0x78] sm:$0xff]
    %v528 = vld [vmem:[#allocation7 + $0x80] sm:$0xff]
    %v529 = vld [vmem:[#allocation7 + $0x88] sm:$0xff]
    %v530 = vld [vmem:[#allocation7 + $0x90] sm:$0xff]
    %v531 = vld [vmem:[#allocation7 + $0x98] sm:$0xff]
    %v532 = vld [vmem:[#allocation7 + $0xa0] sm:$0xff]
    %v533 = vld [vmem:[#allocation7 + $0xa8] sm:$0xff]
    %v534 = vld [vmem:[#allocation7 + $0xb0] sm:$0xff]
    %v535 = vld [vmem:[#allocation7 + $0xb8] sm:$0xff]
    %v536 = vld [vmem:[#allocation7 + $0xc0] sm:$0xff]
    %v537 = vld [vmem:[#allocation7 + $0xc8] sm:$0xff]
    %v538 = vld [vmem:[#allocation7 + $0xd0] sm:$0xff]
    %v539 = vld [vmem:[#allocation7 + $0xd8] sm:$0xff]
    %v540 = vld [vmem:[#allocation7 + $0xe0] sm:$0xff]
    %v541 = vld [vmem:[#allocation7 + $0xe8] sm:$0xff]
    %v542 = vld [vmem:[#allocation7 + $0xf0] sm:$0xff]
    %v543 = vld [vmem:[#allocation7 + $0xf8] sm:$0xff]
    %s544 = scalar_lea.vmem %s8, 3
    %v545 = vld [vmem:[%s544] ss:$8 sm:$0x3]
    %v547 = vlaneseq
    %v548 = vshrl.u32 %v547, 7
    %v549 = vsub.s32 0, %v548
    %v550 = vrot.slane %v545, %v549
    %v551 = vlaneseq
    %v552 = vshrl.u32 %v551, 7
    %v553 = vsub.s32 1, %v552
    %v554 = vrot.slane %v545, %v553
    %v589 = vunpack.c.l.b16 %v512
    %v590 = vunpack.c.h.b16 %v512
    %v591 = vunpack.c.l.b16 %v513
    %v592 = vunpack.c.h.b16 %v513
    %v593 = vunpack.c.l.b16 %v514
    %v594 = vunpack.c.h.b16 %v514
    %v595 = vunpack.c.l.b16 %v515
    %v596 = vunpack.c.h.b16 %v515
    %v597 = vunpack.c.l.b16 %v516
    %v598 = vunpack.c.h.b16 %v516
    %v599 = vunpack.c.l.b16 %v517
    %v600 = vunpack.c.h.b16 %v517
    %v601 = vunpack.c.l.b16 %v518
    %v602 = vunpack.c.h.b16 %v518
    %v603 = vunpack.c.l.b16 %v519
    %v604 = vunpack.c.h.b16 %v519
    %v605 = vunpack.c.l.b16 %v520
    %v606 = vunpack.c.h.b16 %v520
    %v607 = vunpack.c.l.b16 %v521
    %v608 = vunpack.c.h.b16 %v521
    %v609 = vunpack.c.l.b16 %v522
    %v610 = vunpack.c.h.b16 %v522
    %v611 = vunpack.c.l.b16 %v523
    %v612 = vunpack.c.h.b16 %v523
    %v613 = vunpack.c.l.b16 %v524
    %v614 = vunpack.c.h.b16 %v524
    %v615 = vunpack.c.l.b16 %v525
    %v616 = vunpack.c.h.b16 %v525
    %v617 = vunpack.c.l.b16 %v526
    %v618 = vunpack.c.h.b16 %v526
    %v619 = vunpack.c.l.b16 %v527
    %v620 = vunpack.c.h.b16 %v527
    %v621 = vunpack.c.l.b16 %v528
    %v622 = vunpack.c.h.b16 %v528
    %v623 = vunpack.c.l.b16 %v529
    %v624 = vunpack.c.h.b16 %v529
    %v625 = vunpack.c.l.b16 %v530
    %v626 = vunpack.c.h.b16 %v530
    %v627 = vunpack.c.l.b16 %v531
    %v628 = vunpack.c.h.b16 %v531
    %v629 = vunpack.c.l.b16 %v532
    %v630 = vunpack.c.h.b16 %v532
    %v631 = vunpack.c.l.b16 %v533
    %v632 = vunpack.c.h.b16 %v533
    %v633 = vunpack.c.l.b16 %v534
    %v634 = vunpack.c.h.b16 %v534
    %v635 = vunpack.c.l.b16 %v535
    %v636 = vunpack.c.h.b16 %v535
    %v637 = vunpack.c.l.b16 %v536
    %v638 = vunpack.c.h.b16 %v536
    %v639 = vunpack.c.l.b16 %v537
    %v640 = vunpack.c.h.b16 %v537
    %v641 = vunpack.c.l.b16 %v538
    %v642 = vunpack.c.h.b16 %v538
    %v643 = vunpack.c.l.b16 %v539
    %v644 = vunpack.c.h.b16 %v539
    %v645 = vunpack.c.l.b16 %v540
    %v646 = vunpack.c.h.b16 %v540
    %v647 = vunpack.c.l.b16 %v541
    %v648 = vunpack.c.h.b16 %v541
    %v649 = vunpack.c.l.b16 %v542
    %v650 = vunpack.c.h.b16 %v542
    %v651 = vunpack.c.l.b16 %v543
    %v652 = vunpack.c.h.b16 %v543
    %v653 = vpack.c.b16 %v591, %v589
    %v654 = vpack.c.b16 %v592, %v590
    %v655 = vpack.c.b16 %v595, %v593
    %v656 = vpack.c.b16 %v596, %v594
    %v657 = vpack.c.b16 %v599, %v597
    %v658 = vpack.c.b16 %v600, %v598
    %v659 = vpack.c.b16 %v603, %v601
    %v660 = vpack.c.b16 %v604, %v602
    %v661 = vpack.c.b16 %v607, %v605
    %v662 = vpack.c.b16 %v608, %v606
    %v663 = vpack.c.b16 %v611, %v609
    %v664 = vpack.c.b16 %v612, %v610
    %v665 = vpack.c.b16 %v615, %v613
    %v666 = vpack.c.b16 %v616, %v614
    %v667 = vpack.c.b16 %v619, %v617
    %v668 = vpack.c.b16 %v620, %v618
    %v669 = vpack.c.b16 %v623, %v621
    %v670 = vpack.c.b16 %v624, %v622
    %v671 = vpack.c.b16 %v627, %v625
    %v672 = vpack.c.b16 %v628, %v626
    %v673 = vpack.c.b16 %v631, %v629
    %v674 = vpack.c.b16 %v632, %v630
    %v675 = vpack.c.b16 %v635, %v633
    %v676 = vpack.c.b16 %v636, %v634
    %v677 = vpack.c.b16 %v639, %v637
    %v678 = vpack.c.b16 %v640, %v638
    %v679 = vpack.c.b16 %v643, %v641
    %v680 = vpack.c.b16 %v644, %v642
    %v681 = vpack.c.b16 %v647, %v645
    %v682 = vpack.c.b16 %v648, %v646
    %v683 = vpack.c.b16 %v651, %v649
    %v684 = vpack.c.b16 %v652, %v650
    %717 = vmatprep.subr.bf16.mxu0 %v654
    %718 = vmatpush1.bf16.msra.mxu0 %v653
    %719 = vmatprep.subr.bf16.mxu0 %v656
    %720 = vmatpush1.bf16.msra.mxu0 %v655
    %721 = vmatprep.subr.bf16.mxu0 %v658
    %722 = vmatpush1.bf16.msra.mxu0 %v657
    %723 = vmatprep.subr.bf16.mxu0 %v660
    %724 = vmatpush1.bf16.msra.mxu0 %v659
    %725 = vmatprep.subr.bf16.mxu0 %v662
    %726 = vmatpush1.bf16.msra.mxu0 %v661
    %727 = vmatprep.subr.bf16.mxu0 %v664
    %728 = vmatpush1.bf16.msra.mxu0 %v663
    %729 = vmatprep.subr.bf16.mxu0 %v666
    %730 = vmatpush1.bf16.msra.mxu0 %v665
    %731 = vmatprep.subr.bf16.mxu0 %v668
    %732 = vmatpush1.bf16.msra.mxu0 %v667
    %733 = vmatprep.subr.bf16.mxu0 %v670
    %734 = vmatpush1.bf16.msra.mxu0 %v669
    %735 = vmatprep.subr.bf16.mxu0 %v672
    %736 = vmatpush1.bf16.msra.mxu0 %v671
    %737 = vmatprep.subr.bf16.mxu0 %v674
    %738 = vmatpush1.bf16.msra.mxu0 %v673
    %739 = vmatprep.subr.bf16.mxu0 %v676
    %740 = vmatpush1.bf16.msra.mxu0 %v675
    %741 = vmatprep.subr.bf16.mxu0 %v678
    %742 = vmatpush1.bf16.msra.mxu0 %v677
    %743 = vmatprep.subr.bf16.mxu0 %v680
    %744 = vmatpush1.bf16.msra.mxu0 %v679
    %745 = vmatprep.subr.bf16.mxu0 %v682
    %746 = vmatpush1.bf16.msra.mxu0 %v681
    %747 = vmatprep.subr.bf16.mxu0 %v684
    %748 = vmatpush1.bf16.msra.mxu0 %v683
    %749 = vmatprep.mubr.bf16.mxu0 %v511
    %750 = vmatmul.mubr.bf16.gmra.mrb[0].mxu0 %v510
    %v751 = vpop.f32.mrb[0].mxu0
    %v752 = vadd.f32 %v550, %v751
    %v753 = vpop.f32.mrb[0].mxu0
    %v754 = vadd.f32 %v554, %v753
    %v755 = vpop.f32.mrb[0].mxu0
    %v756 = vadd.f32 %v550, %v755
    %v757 = vpop.f32.mrb[0].mxu0
    %v758 = vadd.f32 %v554, %v757
    %759 = vdwg.mxu0
    %v760 = vmax.f32 %v752, 0.0
    %v761 = vmax.f32 %v754, 0.0
    %v762 = vmax.f32 %v756, 0.0
    %v763 = vmax.f32 %v758, 0.0
    %v764 = vpack.c.bf16 %v762, %v760
    %v765 = vpack.c.bf16 %v763, %v761
    %v766 = vld [vmem:[#allocation9] sm:$0xf]
    %v767 = vld [vmem:[#allocation9 + $0x4] sm:$0xf]
    %v768 = vld [vmem:[#allocation9 + $0x8] sm:$0xf]
    %v769 = vld [vmem:[#allocation9 + $0xc] sm:$0xf]
    %v770 = vld [vmem:[#allocation9 + $0x10] sm:$0xf]
    %v771 = vld [vmem:[#allocation9 + $0x14] sm:$0xf]
    %v772 = vld [vmem:[#allocation9 + $0x18] sm:$0xf]
    %v773 = vld [vmem:[#allocation9 + $0x1c] sm:$0xf]
    %v774 = vld [vmem:[#allocation9 + $0x20] sm:$0xf]
    %v775 = vld [vmem:[#allocation9 + $0x24] sm:$0xf]
    %v776 = vld [vmem:[#allocation9 + $0x28] sm:$0xf]
    %v777 = vld [vmem:[#allocation9 + $0x2c] sm:$0xf]
    %v778 = vld [vmem:[#allocation9 + $0x30] sm:$0xf]
    %v779 = vld [vmem:[#allocation9 + $0x34] sm:$0xf]
    %v780 = vld [vmem:[#allocation9 + $0x38] sm:$0xf]
    %v781 = vld [vmem:[#allocation9 + $0x3c] sm:$0xf]
    %v782 = vld [vmem:[#allocation9 + $0x40] sm:$0xf]
    %v783 = vld [vmem:[#allocation9 + $0x44] sm:$0xf]
    %v784 = vld [vmem:[#allocation9 + $0x48] sm:$0xf]
    %v785 = vld [vmem:[#allocation9 + $0x4c] sm:$0xf]
    %v786 = vld [vmem:[#allocation9 + $0x50] sm:$0xf]
    %v787 = vld [vmem:[#allocation9 + $0x54] sm:$0xf]
    %v788 = vld [vmem:[#allocation9 + $0x58] sm:$0xf]
    %v789 = vld [vmem:[#allocation9 + $0x5c] sm:$0xf]
    %v790 = vld [vmem:[#allocation9 + $0x60] sm:$0xf]
    %v791 = vld [vmem:[#allocation9 + $0x64] sm:$0xf]
    %v792 = vld [vmem:[#allocation9 + $0x68] sm:$0xf]
    %v793 = vld [vmem:[#allocation9 + $0x6c] sm:$0xf]
    %v794 = vld [vmem:[#allocation9 + $0x70] sm:$0xf]
    %v795 = vld [vmem:[#allocation9 + $0x74] sm:$0xf]
    %v796 = vld [vmem:[#allocation9 + $0x78] sm:$0xf]
    %v797 = vld [vmem:[#allocation9 + $0x7c] sm:$0xf]
    %v798 = vld [vmem:[%s8 + $0x4] ss:$0 sm:$0xff]
    %v831 = vunpack.c.l.b16 %v766
    %v832 = vunpack.c.l.b16 %v767
    %v833 = vunpack.c.l.b16 %v768
    %v834 = vunpack.c.l.b16 %v769
    %v835 = vunpack.c.l.b16 %v770
    %v836 = vunpack.c.l.b16 %v771
    %v837 = vunpack.c.l.b16 %v772
    %v838 = vunpack.c.l.b16 %v773
    %v839 = vunpack.c.l.b16 %v774
    %v840 = vunpack.c.l.b16 %v775
    %v841 = vunpack.c.l.b16 %v776
    %v842 = vunpack.c.l.b16 %v777
    %v843 = vunpack.c.l.b16 %v778
    %v844 = vunpack.c.l.b16 %v779
    %v845 = vunpack.c.l.b16 %v780
    %v846 = vunpack.c.l.b16 %v781
    %v847 = vunpack.c.l.b16 %v782
    %v848 = vunpack.c.l.b16 %v783
    %v849 = vunpack.c.l.b16 %v784
    %v850 = vunpack.c.l.b16 %v785
    %v851 = vunpack.c.l.b16 %v786
    %v852 = vunpack.c.l.b16 %v787
    %v853 = vunpack.c.l.b16 %v788
    %v854 = vunpack.c.l.b16 %v789
    %v855 = vunpack.c.l.b16 %v790
    %v856 = vunpack.c.l.b16 %v791
    %v857 = vunpack.c.l.b16 %v792
    %v858 = vunpack.c.l.b16 %v793
    %v859 = vunpack.c.l.b16 %v794
    %v860 = vunpack.c.l.b16 %v795
    %v861 = vunpack.c.l.b16 %v796
    %v862 = vunpack.c.l.b16 %v797
    %v863 = vpack.c.b16 %v832, %v831
    %v864 = vpack.c.b16 %v834, %v833
    %v865 = vpack.c.b16 %v836, %v835
    %v866 = vpack.c.b16 %v838, %v837
    %v867 = vpack.c.b16 %v840, %v839
    %v868 = vpack.c.b16 %v842, %v841
    %v869 = vpack.c.b16 %v844, %v843
    %v870 = vpack.c.b16 %v846, %v845
    %v871 = vpack.c.b16 %v848, %v847
    %v872 = vpack.c.b16 %v850, %v849
    %v873 = vpack.c.b16 %v852, %v851
    %v874 = vpack.c.b16 %v854, %v853
    %v875 = vpack.c.b16 %v856, %v855
    %v876 = vpack.c.b16 %v858, %v857
    %v877 = vpack.c.b16 %v860, %v859
    %v878 = vpack.c.b16 %v862, %v861
    %895 = vmatprep.subr.bf16.mxu0 0
    %896 = vmatpush1.bf16.msra.mxu0 %v863
    %897 = vmatprep.subr.bf16.mxu0 0
    %898 = vmatpush1.bf16.msra.mxu0 %v864
    %899 = vmatprep.subr.bf16.mxu0 0
    %900 = vmatpush1.bf16.msra.mxu0 %v865
    %901 = vmatprep.subr.bf16.mxu0 0
    %902 = vmatpush1.bf16.msra.mxu0 %v866
    %903 = vmatprep.subr.bf16.mxu0 0
    %904 = vmatpush1.bf16.msra.mxu0 %v867
    %905 = vmatprep.subr.bf16.mxu0 0
    %906 = vmatpush1.bf16.msra.mxu0 %v868
    %907 = vmatprep.subr.bf16.mxu0 0
    %908 = vmatpush1.bf16.msra.mxu0 %v869
    %909 = vmatprep.subr.bf16.mxu0 0
    %910 = vmatpush1.bf16.msra.mxu0 %v870
    %911 = vmatprep.subr.bf16.mxu0 0
    %912 = vmatpush1.bf16.msra.mxu0 %v871
    %913 = vmatprep.subr.bf16.mxu0 0
    %914 = vmatpush1.bf16.msra.mxu0 %v872
    %915 = vmatprep.subr.bf16.mxu0 0
    %916 = vmatpush1.bf16.msra.mxu0 %v873
    %917 = vmatprep.subr.bf16.mxu0 0
    %918 = vmatpush1.bf16.msra.mxu0 %v874
    %919 = vmatprep.subr.bf16.mxu0 0
    %920 = vmatpush1.bf16.msra.mxu0 %v875
    %921 = vmatprep.subr.bf16.mxu0 0
    %922 = vmatpush1.bf16.msra.mxu0 %v876
    %923 = vmatprep.subr.bf16.mxu0 0
    %924 = vmatpush1.bf16.msra.mxu0 %v877
    %925 = vmatprep.subr.bf16.mxu0 0
    %926 = vmatpush1.bf16.msra.mxu0 %v878
    %927 = vmatprep.mubr.bf16.mxu0 %v765
    %928 = vmatmul.mubr.bf16.gmra.mrb[0].mxu0 %v764
    %v929 = vpop.f32.mrb[0].mxu0
    %v930 = vadd.f32 %v798, %v929
    %v931 = vpop.f32.mrb[0].mxu0
    %v932 = vpop.f32.mrb[0].mxu0
    %v933 = vadd.f32 %v798, %v932
    %v934 = vpop.f32.mrb[0].mxu0
    %935 = vdwg.mxu0
    %v936 = vmax.f32 %v930, 0.0
    %v937 = vmax.f32 %v933, 0.0
    %v938 = vpack.c.bf16 %v937, %v936
    %v939 = vld [vmem:[#allocation10] sm:$0xf]
    %v940 = vld [vmem:[#allocation10 + $0x4] sm:$0xf]
    %v941 = vld [vmem:[#allocation10 + $0x8] sm:$0xf]
    %v942 = vld [vmem:[#allocation10 + $0xc] sm:$0xf]
    %v943 = vld [vmem:[#allocation10 + $0x10] sm:$0xf]
    %v944 = vld [vmem:[#allocation10 + $0x14] sm:$0xf]
    %v945 = vld [vmem:[#allocation10 + $0x18] sm:$0xf]
    %v946 = vld [vmem:[#allocation10 + $0x1c] sm:$0xf]
    %v947 = vld [vmem:[#allocation10 + $0x20] sm:$0xf]
    %v948 = vld [vmem:[#allocation10 + $0x24] sm:$0xf]
    %v949 = vld [vmem:[#allocation10 + $0x28] sm:$0xf]
    %v950 = vld [vmem:[#allocation10 + $0x2c] sm:$0xf]
    %v951 = vld [vmem:[#allocation10 + $0x30] sm:$0xf]
    %v952 = vld [vmem:[#allocation10 + $0x34] sm:$0xf]
    %v953 = vld [vmem:[#allocation10 + $0x38] sm:$0xf]
    %v954 = vld [vmem:[#allocation10 + $0x3c] sm:$0xf]
    %v955 = vld [vmem:[%s8 + $0x5] ss:$0 sm:$0xff]
    %v972 = vunpack.c.l.b16 %v939
    %v973 = vunpack.c.l.b16 %v940
    %v974 = vunpack.c.l.b16 %v941
    %v975 = vunpack.c.l.b16 %v942
    %v976 = vunpack.c.l.b16 %v943
    %v977 = vunpack.c.l.b16 %v944
    %v978 = vunpack.c.l.b16 %v945
    %v979 = vunpack.c.l.b16 %v946
    %v980 = vunpack.c.l.b16 %v947
    %v981 = vunpack.c.l.b16 %v948
    %v982 = vunpack.c.l.b16 %v949
    %v983 = vunpack.c.l.b16 %v950
    %v984 = vunpack.c.l.b16 %v951
    %v985 = vunpack.c.l.b16 %v952
    %v986 = vunpack.c.l.b16 %v953
    %v987 = vunpack.c.l.b16 %v954
    %v988 = vpack.c.b16 %v973, %v972
    %v989 = vpack.c.b16 %v975, %v974
    %v990 = vpack.c.b16 %v977, %v976
    %v991 = vpack.c.b16 %v979, %v978
    %v992 = vpack.c.b16 %v981, %v980
    %v993 = vpack.c.b16 %v983, %v982
    %v994 = vpack.c.b16 %v985, %v984
    %v995 = vpack.c.b16 %v987, %v986
    %1004 = vmatprep.subr.bf16.mxu0 0
    %1005 = vmatpush1.bf16.msra.mxu0 %v988
    %1006 = vmatprep.subr.bf16.mxu0 0
    %1007 = vmatpush1.bf16.msra.mxu0 %v989
    %1008 = vmatprep.subr.bf16.mxu0 0
    %1009 = vmatpush1.bf16.msra.mxu0 %v990
    %1010 = vmatprep.subr.bf16.mxu0 0
    %1011 = vmatpush1.bf16.msra.mxu0 %v991
    %1012 = vmatprep.subr.bf16.mxu0 0
    %1013 = vmatpush1.bf16.msra.mxu0 %v992
    %1014 = vmatprep.subr.bf16.mxu0 0
    %1015 = vmatpush1.bf16.msra.mxu0 %v993
    %1016 = vmatprep.subr.bf16.mxu0 0
    %1017 = vmatpush1.bf16.msra.mxu0 %v994
    %1018 = vmatprep.subr.bf16.mxu0 0
    %1019 = vmatpush1.bf16.msra.mxu0 %v995
    %1020 = vmatprep.subr.bf16.mxu0 0
    %1021 = vmatpush1.bf16.msra.mxu0 0
    %1022 = vmatprep.subr.bf16.mxu0 0
    %1023 = vmatpush1.bf16.msra.mxu0 0
    %1024 = vmatprep.subr.bf16.mxu0 0
    %1025 = vmatpush1.bf16.msra.mxu0 0
    %1026 = vmatprep.subr.bf16.mxu0 0
    %1027 = vmatpush1.bf16.msra.mxu0 0
    %1028 = vmatprep.subr.bf16.mxu0 0
    %1029 = vmatpush1.bf16.msra.mxu0 0
    %1030 = vmatprep.subr.bf16.mxu0 0
    %1031 = vmatpush1.bf16.msra.mxu0 0
    %1032 = vmatprep.subr.bf16.mxu0 0
    %1033 = vmatpush1.bf16.msra.mxu0 0
    %1034 = vmatprep.subr.bf16.mxu0 0
    %1035 = vmatpush1.bf16.msra.mxu0 0
    %1036 = vmatprep.mubr.bf16.mxu0 0
    %1037 = vmatmul.mubr.bf16.gmra.mrb[0].mxu0 %v938
    %v1038 = vpop.f32.mrb[0].mxu0
    %v1039 = vadd.f32 %v955, %v1038
    %v1040 = vpop.f32.mrb[0].mxu0
    %v1041 = vpop.f32.mrb[0].mxu0
    %v1042 = vadd.f32 %v955, %v1041
    %v1043 = vpop.f32.mrb[0].mxu0
    %1044 = vdwg.mxu0
    %v1045 = vmax.f32 %v1039, 0.0
    %v1046 = vmax.f32 %v1042, 0.0
    %v1047 = vpack.c.bf16 %v1046, %v1045
    %v1048 = vld [vmem:[#allocation12] sm:$0xf]
    %v1049 = vld [vmem:[#allocation12 + $0x4] sm:$0xf]
    %v1050 = vld [vmem:[#allocation12 + $0x8] sm:$0xf]
    %v1051 = vld [vmem:[#allocation12 + $0xc] sm:$0xf]
    %v1052 = vld [vmem:[#allocation12 + $0x10] sm:$0xf]
    %v1053 = vld [vmem:[#allocation12 + $0x14] sm:$0xf]
    %v1054 = vld [vmem:[#allocation12 + $0x18] sm:$0xf]
    %v1055 = vld [vmem:[#allocation12 + $0x1c] sm:$0xf]
    %v1056 = vld [vmem:[#allocation12 + $0x20] sm:$0xf]
    %v1057 = vld [vmem:[#allocation12 + $0x24] sm:$0xf]
    %v1058 = vld [vmem:[#allocation12 + $0x28] sm:$0xf]
    %v1059 = vld [vmem:[#allocation12 + $0x2c] sm:$0xf]
    %v1060 = vld [vmem:[#allocation12 + $0x30] sm:$0xf]
    %v1061 = vld [vmem:[#allocation12 + $0x34] sm:$0xf]
    %v1062 = vld [vmem:[#allocation12 + $0x38] sm:$0xf]
    %v1063 = vld [vmem:[#allocation12 + $0x3c] sm:$0xf]
    %v1064 = vld [vmem:[%s8 + $0x6] ss:$0 sm:$0xff]
    %v1081 = vunpack.c.l.b16 %v1048
    %v1082 = vunpack.c.l.b16 %v1049
    %v1083 = vunpack.c.l.b16 %v1050
    %v1084 = vunpack.c.l.b16 %v1051
    %v1085 = vunpack.c.l.b16 %v1052
    %v1086 = vunpack.c.l.b16 %v1053
    %v1087 = vunpack.c.l.b16 %v1054
    %v1088 = vunpack.c.l.b16 %v1055
    %v1089 = vunpack.c.l.b16 %v1056
    %v1090 = vunpack.c.l.b16 %v1057
    %v1091 = vunpack.c.l.b16 %v1058
    %v1092 = vunpack.c.l.b16 %v1059
    %v1093 = vunpack.c.l.b16 %v1060
    %v1094 = vunpack.c.l.b16 %v1061
    %v1095 = vunpack.c.l.b16 %v1062
    %v1096 = vunpack.c.l.b16 %v1063
    %v1097 = vpack.c.b16 %v1082, %v1081
    %v1098 = vpack.c.b16 %v1084, %v1083
    %v1099 = vpack.c.b16 %v1086, %v1085
    %v1100 = vpack.c.b16 %v1088, %v1087
    %v1101 = vpack.c.b16 %v1090, %v1089
    %v1102 = vpack.c.b16 %v1092, %v1091
    %v1103 = vpack.c.b16 %v1094, %v1093
    %v1104 = vpack.c.b16 %v1096, %v1095
    %1113 = vmatprep.subr.bf16.mxu0 0
    %1114 = vmatpush1.bf16.msra.mxu0 %v1097
    %1115 = vmatprep.subr.bf16.mxu0 0
    %1116 = vmatpush1.bf16.msra.mxu0 %v1098
    %1117 = vmatprep.subr.bf16.mxu0 0
    %1118 = vmatpush1.bf16.msra.mxu0 %v1099
    %1119 = vmatprep.subr.bf16.mxu0 0
    %1120 = vmatpush1.bf16.msra.mxu0 %v1100
    %1121 = vmatprep.subr.bf16.mxu0 0
    %1122 = vmatpush1.bf16.msra.mxu0 %v1101
    %1123 = vmatprep.subr.bf16.mxu0 0
    %1124 = vmatpush1.bf16.msra.mxu0 %v1102
    %1125 = vmatprep.subr.bf16.mxu0 0
    %1126 = vmatpush1.bf16.msra.mxu0 %v1103
    %1127 = vmatprep.subr.bf16.mxu0 0
    %1128 = vmatpush1.bf16.msra.mxu0 %v1104
    %1129 = vmatprep.subr.bf16.mxu0 0
    %1130 = vmatpush1.bf16.msra.mxu0 0
    %1131 = vmatprep.subr.bf16.mxu0 0
    %1132 = vmatpush1.bf16.msra.mxu0 0
    %1133 = vmatprep.subr.bf16.mxu0 0
    %1134 = vmatpush1.bf16.msra.mxu0 0
    %1135 = vmatprep.subr.bf16.mxu0 0
    %1136 = vmatpush1.bf16.msra.mxu0 0
    %1137 = vmatprep.subr.bf16.mxu0 0
    %1138 = vmatpush1.bf16.msra.mxu0 0
    %1139 = vmatprep.subr.bf16.mxu0 0
    %1140 = vmatpush1.bf16.msra.mxu0 0
    %1141 = vmatprep.subr.bf16.mxu0 0
    %1142 = vmatpush1.bf16.msra.mxu0 0
    %1143 = vmatprep.subr.bf16.mxu0 0
    %1144 = vmatpush1.bf16.msra.mxu0 0
    %1145 = vmatprep.mubr.bf16.mxu0 0
    %1146 = vmatmul.mubr.bf16.gmra.mrb[0].mxu0 %v1047
    %v1147 = vpop.f32.mrb[0].mxu0
    %v1148 = vadd.f32 %v1064, %v1147
    %v1149 = vpop.f32.mrb[0].mxu0
    %v1150 = vpop.f32.mrb[0].mxu0
    %v1151 = vadd.f32 %v1064, %v1150
    %v1152 = vpop.f32.mrb[0].mxu0
    %1153 = vdwg.mxu0
    %v1154 = vpack.c.bf16 %v1151, %v1148
    %v1156 = vunpack.c.l.b16 %v1154
    %v1157 = vunpack.c.h.b16 %v1154
    %v1158 = vpack.c.b16 %v1156, %v1156
    %v1159 = vpack.c.b16 %v1157, %v1157
    %1162 = vst [vmem:[%s9] sm:$0xf] %v1158
    %1163 = vst [vmem:[%s9 + $0x4] sm:$0xf] %v1159
    // Predicated region
    $region66: #{_forward_impl.1} parent=1 // pred_check
      _
    $region67: #{_forward_impl.1} parent=1 // pred_check_branch
      %1165 = sbr.rel (0) target = $region69
    $region68: #{_forward_impl.1} parent=1 // pred_region
      _
    $region69: #{_forward_impl.1} parent=1 // pred_fallthru
      _
    // Predicated region
    $region70: #{_forward_impl.1} parent=1 // pred_check
      _
    $region71: #{_forward_impl.1} parent=1 // pred_check_branch
      %1167 = sbr.rel (0) target = $region73
    $region72: #{_forward_impl.1} parent=1 // pred_region
      _
    $region73: #{_forward_impl.1} parent=1 // pred_fallthru
      _
    %1168 = vsyncpa [#allocation3], 1
    %1169 = vsyncpa [#allocation5], 1
    %1170 = vsyncpa [#allocation8], 1
    %1171 = vsyncpa [#allocation11], 1

</llo_original>
